<compile_context>
chip_gen: v5e
topology: v5e:2x2
jax: 0.10.0
libtpu: 0.0.40
codegen_flags: <defaults>
</compile_context>

<pallas_src>
import functools

import jax
import jax.numpy as jnp
from jax import lax
from jax.experimental import pallas as pl
from jax.experimental.pallas import tpu as pltpu


_MIB = 1024 * 1024
_LANE = 128
_TM_PREF = 512            # preferred output-row tile
_TN_PREF = 512            # preferred output-col tile
_MIN_PALLAS_WORK = 128 * 128 * 128   # per-head I*N*K below this -> jnp.einsum


# ------------------------------ small helpers -------------------------------

def _round_up(x, m):
    return ((x + m - 1) // m) * m


def _vmem_capacity_bytes():
    """Queried VMEM capacity (128 MiB v5e/v6e, 64 MiB v7x); conservative fallback."""
    try:
        cap = int(pltpu.get_tpu_info().vmem_capacity_bytes)
        if cap > 0:
            return cap
    except Exception:
        pass
    return 64 * _MIB


def _largest_aligned_divisor(dim, upper, align=_LANE):
    """Largest `align`-multiple divisor of `dim` (itself an `align` multiple)
    that is <= `upper`. Falls back to `align`."""
    t = min(dim, (upper // align) * align)
    while t > align:
        if dim % t == 0:
            return t
        t -= align
    return align


def _next_smaller_divisor(dim, current, align=_LANE):
    """Largest `align`-multiple divisor of `dim` strictly below `current`."""
    t = current - align
    while t > align:
        if dim % t == 0:
            return t
        t -= align
    return align


def _select_tiles(I, N, K, a_item, b_item, o_item, budget, max_tile_k=None):
    """Pick (tm, tn, tk) for padded dims so double-buffered tiles + acc fit budget."""
    tm = _largest_aligned_divisor(I, _TM_PREF)
    tn = _largest_aligned_divisor(N, _TN_PREF)
    tk = K if max_tile_k is None else _largest_aligned_divisor(K, max_tile_k)

    def footprint(tm, tn, tk):
        acc = tm * tn * 4 if (K // tk) > 1 else 0
        return 2 * (tm * tk * a_item + tn * tk * b_item + tm * tn * o_item) + acc

    while footprint(tm, tn, tk) > budget:
        if tk > 512:
            tk = _next_smaller_divisor(K, tk)
        elif tm >= tn and tm > _LANE:
            tm = _next_smaller_divisor(I, tm)
        elif tn > _LANE:
            tn = _next_smaller_divisor(N, tn)
        elif tk > _LANE:
            tk = _next_smaller_divisor(K, tk)
        elif tm > _LANE:
            tm = _next_smaller_divisor(I, tm)
        else:
            break
    return tm, tn, tk, footprint(tm, tn, tk)


# ------------------------------ Pallas kernels ------------------------------

def _dot(a, b, dims, precision):
    if precision is None:
        return lax.dot_general(a, b, dimension_numbers=dims,
                               preferred_element_type=jnp.float32)
    return lax.dot_general(a, b, dimension_numbers=dims,
                           preferred_element_type=jnp.float32,
                           precision=precision)


def _single_step_kernel(a_ref, b_ref, o_ref, *, dims, precision):
    # Whole contraction in one MXU call: no accumulator, no pl.when branches.
    o_ref[...] = _dot(a_ref[...], b_ref[...], dims, precision).astype(o_ref.dtype)


def _multi_step_kernel(a_ref, b_ref, o_ref, acc_ref, *, dims, precision):
    @pl.when(pl.program_id(3) == 0)
    def _():
        acc_ref[...] = jnp.zeros_like(acc_ref)

    acc_ref[...] += _dot(a_ref[...], b_ref[...], dims, precision)

    @pl.when(pl.program_id(3) == pl.num_programs(3) - 1)
    def _():
        o_ref[...] = acc_ref[...].astype(o_ref.dtype)


# --------------------------------- wrapper ----------------------------------

def _batched_matmul(a, b, *, rhs_contract_last, out_dtype, precision,
                    max_tile_k=None):
    """a: (BH, I, K);  b: (BH, N, K) if rhs_contract_last else (BH, K, N)."""
    BH, I, K = a.shape
    if rhs_contract_last:
        _, N, Kb = b.shape
        dims = (((1,), (1,)), ((), ()))     # contract last dims (no transpose)
    else:
        _, Kb, N = b.shape
        dims = (((1,), (0,)), ((), ()))
    assert Kb == K and b.shape[0] == BH

    # ---- pad to 128-multiples: K zero-pad is exact; I/N padding is sliced off,
    #      and padding N keeps output stores lane-dense (no masked vst).
    Ip, Np, Kp = _round_up(I, _LANE), _round_up(N, _LANE), _round_up(K, _LANE)
    if Ip != I or Kp != K:
        a = jnp.pad(a, ((0, 0), (0, Ip - I), (0, Kp - K)))
    if rhs_contract_last:
        if Np != N or Kp != K:
            b = jnp.pad(b, ((0, 0), (0, Np - N), (0, Kp - K)))
    else:
        if Kp != K or Np != N:
            b = jnp.pad(b, ((0, 0), (0, Kp - K), (0, Np - N)))

    a_item = jnp.dtype(a.dtype).itemsize
    b_item = jnp.dtype(b.dtype).itemsize
    o_item = jnp.dtype(out_dtype).itemsize

    # ---- generation-aware tile selection (budget = half the queried VMEM).
    vmem_cap = _vmem_capacity_bytes()
    budget = vmem_cap // 2
    tm, tn, tk, footprint = _select_tiles(Ip, Np, Kp, a_item, b_item, o_item,
                                          budget, max_tile_k=max_tile_k)
    m_steps, n_steps, k_steps = Ip // tm, Np // tn, Kp // tk

    if k_steps == 1:
        # Common attention case (K = D fits one chunk): no accumulator scratch,
        # 3-D all-parallel grid (BH leading -> shards across v7x's 2 TCs).
        grid = (BH, m_steps, n_steps)
        kernel = functools.partial(_single_step_kernel, dims=dims,
                                   precision=precision)
        a_spec = pl.BlockSpec((pl.Squeezed(), tm, tk),
                              lambda bh, i, j: (bh, i, 0))
        if rhs_contract_last:
            b_spec = pl.BlockSpec((pl.Squeezed(), tn, tk),
                                  lambda bh, i, j: (bh, j, 0))
        else:
            # When tn == Np the block index is constant across i -> the B slab
            # stays resident in VMEM across all I-tiles of a head.
            b_spec = pl.BlockSpec((pl.Squeezed(), tk, tn),
                                  lambda bh, i, j: (bh, 0, j))
        out_spec = pl.BlockSpec((pl.Squeezed(), tm, tn),
                                lambda bh, i, j: (bh, i, j))
        scratch_shapes = ()
        semantics = ("parallel", "parallel", "parallel")
    else:
        grid = (BH, m_steps, n_steps, k_steps)     # reduction axis last
        kernel = functools.partial(_multi_step_kernel, dims=dims,
                                   precision=precision)
        a_spec = pl.BlockSpec((pl.Squeezed(), tm, tk),
                              lambda bh, i, j, k: (bh, i, k))
        if rhs_contract_last:
            b_spec = pl.BlockSpec((pl.Squeezed(), tn, tk),
                                  lambda bh, i, j, k: (bh, j, k))
        else:
            b_spec = pl.BlockSpec((pl.Squeezed(), tk, tn),
                                  lambda bh, i, j, k: (bh, k, j))
        out_spec = pl.BlockSpec((pl.Squeezed(), tm, tn),
                                lambda bh, i, j, k: (bh, i, j))
        scratch_shapes = (pltpu.VMEM((tm, tn), jnp.float32),)
        semantics = ("parallel", "parallel", "parallel", "arbitrary")

    # ---- VMEM limit: generous headroom but never the whole physical VMEM
    # (~48 MiB ceiling on v7x's 64 MiB, ~112 MiB on 128 MiB parts).
    ceiling = max(vmem_cap - 16 * _MIB, vmem_cap // 2)
    vmem_limit = int(min(ceiling, max(32 * _MIB, 2 * footprint)))

    # ---- advisory cost: actual tiled traffic (re-reads included).
    a_rereads = n_steps if k_steps > 1 else 1
    b_rereads = m_steps if (k_steps > 1 or n_steps > 1) else 1
    cost = pl.CostEstimate(
        flops=2 * BH * Ip * Np * Kp,
        transcendentals=0,
        bytes_accessed=int(BH * (Ip * Kp * a_item * a_rereads
                                 + Kp * Np * b_item * b_rereads
                                 + Ip * Np * o_item)))

    # TODO(synk): if profiles show exposed DMA in the single-K-step regime on
    # v5e, add pipeline_mode=pl.Buffered(3) to a_spec/b_spec (re-check the
    # budget before enabling on v7x).
    out = pl.pallas_call(
        kernel,
        out_shape=jax.ShapeDtypeStruct((BH, Ip, Np), out_dtype),
        grid_spec=pltpu.PrefetchScalarGridSpec(
            num_scalar_prefetch=0,
            grid=grid,
            in_specs=[a_spec, b_spec],
            out_specs=out_spec,
            scratch_shapes=scratch_shapes),
        compiler_params=pltpu.CompilerParams(
            dimension_semantics=semantics,
            vmem_limit_bytes=vmem_limit),
        cost_estimate=cost,
    )(a, b)

    if Ip != I or Np != N:
        out = out[:, :I, :N]
    return out


# -------------------------------- Module-like --------------------------------

class Einsum:
    """JAX/Pallas equivalent of the PyTorch `einsum(RelPropSimple)` module's
    forward pass: out = einsum(equation, *operands).

    use_bf16=True casts the operands to bfloat16 at the kernel boundary while
    keeping float32 accumulation (big MXU / HBM win on v6e/v7x).
    """

    def __init__(self, equation, *, use_bf16=False, precision=None):
        self.equation = equation
        self.use_bf16 = use_bf16
        # TODO(synk): pass precision=lax.Precision.HIGHEST here if exact f32
        # matmul semantics (matching torch CPU f32) are required.
        self.precision = precision

    def _prep(self, a, b):
        if self.use_bf16:
            return a.astype(jnp.bfloat16), b.astype(jnp.bfloat16), None
        return a, b, self.precision

    def __call__(self, *operands):
        eq = self.equation.replace(" ", "")
        if eq == "bhid,bhjd->bhij" and len(operands) == 2:
            a, b = operands
            B, H, I, D = a.shape
            J = b.shape[2]
            if I * J * D < _MIN_PALLAS_WORK:
                return jnp.einsum(eq, a, b)       # tiny: not worth a kernel
            out_dtype = jnp.promote_types(a.dtype, b.dtype)
            a2, b2, prec = self._prep(a.reshape(B * H, I, D),
                                      b.reshape(B * H, J, D))
            out = _batched_matmul(a2, b2, rhs_contract_last=True,
                                  out_dtype=out_dtype, precision=prec)
            return out.reshape(B, H, I, J)

        if eq == "bhij,bhjd->bhid" and len(operands) == 2:
            a, b = operands
            B, H, I, J = a.shape
            D = b.shape[3]
            if I * J * D < _MIN_PALLAS_WORK:
                return jnp.einsum(eq, a, b)
            out_dtype = jnp.promote_types(a.dtype, b.dtype)
            a2, b2, prec = self._prep(a.reshape(B * H, I, J),
                                      b.reshape(B * H, J, D))
            out = _batched_matmul(a2, b2, rhs_contract_last=False,
                                  out_dtype=out_dtype, precision=prec)
            return out.reshape(B, H, I, D)

        # TODO(synk): only the attention-style batched-matmul equations are
        # lowered to a Pallas kernel; other equations fall back to XLA einsum.
        return jnp.einsum(self.equation, *operands)


# ----------------------------------- Demo ------------------------------------

if __name__ == "__main__":
    key = jax.random.PRNGKey(0)
    B, H, S, D = 2, 4, 256, 64

    kq, kk, kp, kv = jax.random.split(key, 4)
    q = jax.random.normal(kq, (B, H, S, D), dtype=jnp.float32)
    k = jax.random.normal(kk, (B, H, S, D), dtype=jnp.float32)
    p = jax.random.normal(kp, (B, H, S, S), dtype=jnp.float32)
    v = jax.random.normal(kv, (B, H, S, D), dtype=jnp.float32)

    def rel_err(x, y):
        return float(jnp.max(jnp.abs(x - y)) / (jnp.max(jnp.abs(y)) + 1e-6))

    # 1) attention scores: 'bhid,bhjd->bhij' (Pallas path, single reduction step)
    scores = Einsum("bhid,bhjd->bhij")(q, k)
    jax.block_until_ready(scores)
    ref_scores = jnp.einsum("bhid,bhjd->bhij", q, k,
                            precision=lax.Precision.HIGHEST)
    assert scores.shape == ref_scores.shape
    assert rel_err(scores, ref_scores) < 1e-2

    # 2) attention output: 'bhij,bhjd->bhid' (Pallas path, D padded 64 -> 128,
    #    V slab resident across I-tiles)
    out = Einsum("bhij,bhjd->bhid")(p, v)
    jax.block_until_ready(out)
    ref_out = jnp.einsum("bhij,bhjd->bhid", p, v, precision=lax.Precision.HIGHEST)
    assert out.shape == ref_out.shape
    assert rel_err(out, ref_out) < 1e-2

    # 3) non-128-divisible sequence length exercises wrapper-side padding.
    S2 = 192
    q2, k2 = q[:, :, :S2, :], k[:, :, :S2, :]
    scores2 = Einsum("bhid,bhjd->bhij")(q2, k2)
    jax.block_until_ready(scores2)
    ref2 = jnp.einsum("bhid,bhjd->bhij", q2, k2, precision=lax.Precision.HIGHEST)
    assert scores2.shape == (B, H, S2, S2)
    assert rel_err(scores2, ref2) < 1e-2

    # 4) bf16 fast path (f32 accumulation), looser tolerance.
    scores_bf16 = Einsum("bhid,bhjd->bhij", use_bf16=True)(q, k)
    jax.block_until_ready(scores_bf16)
    assert rel_err(scores_bf16, ref_scores) < 5e-2

    # 5) exercise the multi-K-step accumulator kernel (cap tk to force it).
    out_acc = _batched_matmul(p.reshape(B * H, S, S), v.reshape(B * H, S, D),
                              rhs_contract_last=False, out_dtype=jnp.float32,
                              precision=None, max_tile_k=128)
    jax.block_until_ready(out_acc)
    assert rel_err(out_acc.reshape(B, H, S, D), ref_out) < 1e-2

    # 6) tiny shapes route to jnp.einsum (kernel launch not worth it).
    q_t, k_t = q[:, :, :8, :32], k[:, :, :8, :32]
    tiny = Einsum("bhid,bhjd->bhij")(q_t, k_t)
    jax.block_until_ready(tiny)
    assert jnp.allclose(tiny, jnp.einsum("bhid,bhjd->bhij", q_t, k_t),
                        atol=1e-4, rtol=1e-4)

    print("KERNEL_OK")
</pallas_src>

<mosaic_0001>
module attributes {stable_mosaic.version = 11 : i64} {
  func.func @_single_step_kernel(%arg0: i32, %arg1: i32, %arg2: i32, %arg3: memref<1x256x128xf32, #tpu.memory_space<vmem>>, %arg4: memref<1x256x128xf32, #tpu.memory_space<vmem>>, %arg5: memref<1x256x256xf32, #tpu.memory_space<vmem>>) attributes {dimension_semantics = [#tpu.dimension_semantics<parallel>, #tpu.dimension_semantics<parallel>, #tpu.dimension_semantics<parallel>], iteration_bounds = array<i64: 8, 1, 1>, scalar_prefetch = 0 : i64, scratch_operands = 0 : i64, tpu.core_type = #tpu.core_type<tc>, window_params = [{transform_indices = @transform_0, window_bounds = array<i64: 1, 256, 128>}, {transform_indices = @transform_1, window_bounds = array<i64: 1, 256, 128>}, {transform_indices = @transform_2, window_bounds = array<i64: 1, 256, 256>}]} {
    %c0 = arith.constant 0 : index
    %c0_0 = arith.constant 0 : index
    %c0_1 = arith.constant 0 : index
    %0 = vector.load %arg3[%c0, %c0_0, %c0_1] : memref<1x256x128xf32, #tpu.memory_space<vmem>>, vector<1x256x128xf32>
    %1 = vector.shape_cast %0 : vector<1x256x128xf32> to vector<256x128xf32>
    %c0_2 = arith.constant 0 : index
    %c0_3 = arith.constant 0 : index
    %c0_4 = arith.constant 0 : index
    %2 = vector.load %arg4[%c0_2, %c0_3, %c0_4] : memref<1x256x128xf32, #tpu.memory_space<vmem>>, vector<1x256x128xf32>
    %3 = vector.shape_cast %2 : vector<1x256x128xf32> to vector<256x128xf32>
    %cst = arith.constant dense<0.000000e+00> : vector<256x256xf32>
    %4 = tpu.matmul %1, %3, %cst {dimension_numbers = #tpu.dot_dimension_numbers<[1], [1], [0], [0], [0, 0, 1, 0], [], []>} : vector<256x128xf32>, vector<256x128xf32>, vector<256x256xf32> -> vector<256x256xf32>
    %c0_5 = arith.constant 0 : index
    %c0_6 = arith.constant 0 : index
    %c0_7 = arith.constant 0 : index
    %5 = vector.load %arg5[%c0_5, %c0_6, %c0_7] : memref<1x256x256xf32, #tpu.memory_space<vmem>>, vector<1x256x256xf32>
    %6 = vector.shape_cast %5 : vector<1x256x256xf32> to vector<256x256xf32>
    %7 = vector.shape_cast %4 : vector<256x256xf32> to vector<1x256x256xf32>
    tpu.vector_store %arg5[%c0_5, %c0_6, %c0_7], %7 {strides = array<i32>} : memref<1x256x256xf32, #tpu.memory_space<vmem>>, vector<1x256x256xf32>,
    return
  }
  func.func @transform_0(%arg0: i32, %arg1: i32, %arg2: i32) -> (i32, i32, i32) {
    %c0_i32 = arith.constant 0 : i32
    %c0_i32_0 = arith.constant 0 : i32
    return %arg0, %arg1, %c0_i32 : i32, i32, i32
  }
  func.func @transform_1(%arg0: i32, %arg1: i32, %arg2: i32) -> (i32, i32, i32) {
    %c0_i32 = arith.constant 0 : i32
    %c0_i32_0 = arith.constant 0 : i32
    return %arg0, %arg2, %c0_i32 : i32, i32, i32
  }
  func.func @transform_2(%arg0: i32, %arg1: i32, %arg2: i32) -> (i32, i32, i32) {
    %c0_i32 = arith.constant 0 : i32
    return %arg0, %arg1, %arg2 : i32, i32, i32
  }
}

</mosaic_0001>

<llo_original>
// kernel: tpu_custom_call.1
$region0: #{tpu_custom_call.1}
  #allocation0 [shape = 'u32[]', space=smem, size = 0x4, offset = 0x4, fixed_abs, tag = 'smem constant byte address 0x4 - core index']
  #allocation1 [shape = 'u32[72,128]{1,0:T(1,128)}', space=vmem, size = 0x9000, scoped, tag = 'internal scratch']
  %s0 = inlined_call_operand.hbm [shape: f32[8,256,128], index: 0, kind: input, shape index: {}]
  %s1 = inlined_call_operand.hbm [shape: f32[8,256,128], index: 1, kind: input, shape index: {}]
  %s2 = inlined_call_operand.hbm [shape: f32[8,256,256], index: 2, kind: output, shape index: {}]
  %s3 = sld [smem:[#allocation0]]
  $region49: #{tpu_custom_call.1} parent=0
    _
  %s5 = ssub.s32 1, %s3
  %s6 = scalar_select 0, %s5, %s3
  $region1: #{tpu_custom_call.1} parent=0
    #allocation2 [shape = 'u8[262144]{0}', space=vmem, size = 0x40000, scoped, tag = 'input window, operand 0']
    #allocation3 [shape = 's32[2]{0}', space=sflag, size = 0x8, scoped, tag = 'scoped memory for tpu_custom_call.1']
    #allocation4 [shape = 's32[2]{0}', space=sflag, size = 0x8, scoped, tag = 'scoped memory for tpu_custom_call.1']
    #allocation5 [shape = 'u8[262144]{0}', space=vmem, size = 0x40000, scoped, tag = 'input window, operand 1']
    #allocation6 [shape = 's32[2]{0}', space=sflag, size = 0x8, scoped, tag = 'scoped memory for tpu_custom_call.1']
    #allocation7 [shape = 'u8[524288]{0}', space=vmem, size = 0x80000, scoped, tag = 'output window, operand 0']
    %7 = vsyncpa [#allocation3], 0
    %s8 = scalar_lea.sflag [#allocation3], 1
    %9 = vsyncpa %s8, 0
    %10 = vsyncpa [#allocation6], 0
    %s11 = scalar_lea.sflag [#allocation6], 1
    %12 = vsyncpa %s11, 0
    %13 = vsyncpa [#allocation4], 0
    %s14 = scalar_lea.sflag [#allocation4], 1
    %15 = vsyncpa %s14, 0
    loop: start=0, step=1, limit=10
    $region2: #{tpu_custom_call.1} parent=1 // loop_pre_header
      _
    $region3: #{tpu_custom_call.1} parent=1 // loop_header
      %s17 = sphi 0, %s21
      %p18 = scmp.ge.s32.totalorder %s17, 10
      %s24 = sphi 0, %s43
      %s25 = sphi 0, %s39
      %s26 = sphi 0, %s35
      %s27 = sphi 0, %s24
      %s28 = sphi 0, %s25
      %s29 = sphi 0, %s26
      %s30 = sphi 0, %s27
      %s31 = sphi 0, %s28
      %s32 = sphi 0, %s29
      %s48 = sphi 0, %s50
      %s51 = sphi 0, %s48
      %s52 = sphi 0, %s51
      %s68 = sphi 0, %s52
      %s76 = sphi 0, %s78
      %s79 = sphi 0, %s76
      %s80 = sphi 0, %s79
      %s96 = sphi 0, %s80
      %s106 = sphi 0, %s108
      %s109 = sphi 0, %s106
      %s110 = sphi 0, %s109
      %s126 = sphi 0, %s110
    $region4: #{tpu_custom_call.1} parent=1 // loop_header_branch
      %20 = sbr.rel (%p18) target = $region8
    $region5: #{tpu_custom_call.1} parent=1 // loop_body
      %s22 = ssub.s32 %s17, 1
      %s23 = ssub.s32 %s17, 2
      %s33 = sadd.s32 1, %s26
      %p34 = scmp.ge.s32.totalorder %s33, 1
      %s35 = scalar_select %p34, 0, %s33
      %s36 = sadd.s32 1, %s25
      %s37 = scalar_select %p34, %s36, %s25
      %p38 = scmp.ge.s32.totalorder %s37, 1
      %s39 = scalar_select %p38, 0, %s37
      %s40 = sadd.s32 1, %s24
      %s41 = scalar_select %p38, %s40, %s24
      %p42 = scmp.ge.s32.totalorder %s41, 8
      %s43 = scalar_select %p42, 0, %s41
      %s44 = ssub.s32 %s24, %s43
      %s45 = ssub.s32 %s25, %s39
      %s46 = sor.u32 %s44, %s45
      %p47 = scmp.eq.s32.totalorder %s46, 0
      %s49 = sadd.s32 %s48, 1
      %s50 = scalar_select %p47, %s48, %s49
      %p53 = pneg %p47
      %p54 = scmp.eq.s32.totalorder %s17, 7
      %p55 = por %p53, %p54
      %p56 = scmp.ne.s32.totalorder %s48, %s51
      %p57 = scmp.eq.s32.totalorder %s17, 0
      %p58 = por %p56, %p57
      %p59 = scmp.ne.s32.totalorder %s48, %s51
      %p60 = scmp.eq.s32.totalorder %s22, 7
      %p61 = por %p59, %p60
      %p62 = scmp.ne.s32.totalorder %s51, %s52
      %p63 = scmp.eq.s32.totalorder %s22, 0
      %p64 = por %p62, %p63
      %p65 = scmp.ne.s32.totalorder %s51, %s52
      %p66 = scmp.eq.s32.totalorder %s23, 7
      %p67 = por %p65, %p66
      %p69 = scmp.ne.s32.totalorder %s52, %s68
      %p70 = scmp.eq.s32.totalorder %s23, 0
      %p71 = por %p69, %p70
      %s72 = ssub.s32 %s24, %s43
      %s73 = ssub.s32 %s26, %s35
      %s74 = sor.u32 %s72, %s73
      %p75 = scmp.eq.s32.totalorder %s74, 0
      %s77 = sadd.s32 %s76, 1
      %s78 = scalar_select %p75, %s76, %s77
      %p81 = pneg %p75
      %p82 = scmp.eq.s32.totalorder %s17, 7
      %p83 = por %p81, %p82
      %p84 = scmp.ne.s32.totalorder %s76, %s79
      %p85 = scmp.eq.s32.totalorder %s17, 0
      %p86 = por %p84, %p85
      %p87 = scmp.ne.s32.totalorder %s76, %s79
      %p88 = scmp.eq.s32.totalorder %s22, 7
      %p89 = por %p87, %p88
      %p90 = scmp.ne.s32.totalorder %s79, %s80
      %p91 = scmp.eq.s32.totalorder %s22, 0
      %p92 = por %p90, %p91
      %p93 = scmp.ne.s32.totalorder %s79, %s80
      %p94 = scmp.eq.s32.totalorder %s23, 7
      %p95 = por %p93, %p94
      %p97 = scmp.ne.s32.totalorder %s80, %s96
      %p98 = scmp.eq.s32.totalorder %s23, 0
      %p99 = por %p97, %p98
      %s100 = ssub.s32 %s24, %s43
      %s101 = ssub.s32 %s25, %s39
      %s102 = sor.u32 %s100, %s101
      %s103 = ssub.s32 %s26, %s35
      %s104 = sor.u32 %s102, %s103
      %p105 = scmp.eq.s32.totalorder %s104, 0
      %s107 = sadd.s32 %s106, 1
      %s108 = scalar_select %p105, %s106, %s107
      %p111 = pneg %p105
      %p112 = scmp.eq.s32.totalorder %s17, 7
      %p113 = por %p111, %p112
      %p114 = scmp.ne.s32.totalorder %s106, %s109
      %p115 = scmp.eq.s32.totalorder %s17, 0
      %p116 = por %p114, %p115
      %p117 = scmp.ne.s32.totalorder %s106, %s109
      %p118 = scmp.eq.s32.totalorder %s22, 7
      %p119 = por %p117, %p118
      %p120 = scmp.ne.s32.totalorder %s109, %s110
      %p121 = scmp.eq.s32.totalorder %s22, 0
      %p122 = por %p120, %p121
      %p123 = scmp.ne.s32.totalorder %s109, %s110
      %p124 = scmp.eq.s32.totalorder %s23, 7
      %p125 = por %p123, %p124
      %p127 = scmp.ne.s32.totalorder %s110, %s126
      %p128 = scmp.eq.s32.totalorder %s23, 0
      %p129 = por %p127, %p128
      %p130 = scmp.le.s32.totalorder 1, %s17
      %p131 = scmp.lt.s32.totalorder %s17, 9
      %p132 = pnand %p130, %p131
      %p133 = pneg %p132
      // Predicated region
      $region9: #{tpu_custom_call.1} parent=5 // pred_check
        _
      $region10: #{tpu_custom_call.1} parent=5 // pred_check_branch
        %135 = sbr.rel (%p132) target = $region12
      $region11: #{tpu_custom_call.1} parent=5 // pred_region
        %s136 = ssub.s32 %s17, 1
      $region12: #{tpu_custom_call.1} parent=5 // pred_fallthru
        _
      %p137 = scmp.lt.s32.totalorder %s17, 8
      // Predicated region
      $region13: #{tpu_custom_call.1} parent=5 // pred_check
        %p138 = pneg %p137
      $region14: #{tpu_custom_call.1} parent=5 // pred_check_branch
        %140 = sbr.rel (%p138) target = $region16
      $region15: #{tpu_custom_call.1} parent=5 // pred_region
        // Predicated region
        $region17: #{tpu_custom_call.1} parent=15 // pred_check
          %p141 = pneg %p58
        $region18: #{tpu_custom_call.1} parent=15 // pred_check_branch
          %143 = sbr.rel (%p141) target = $region20
        $region19: #{tpu_custom_call.1} parent=15 // pred_region
          %s144 = sand.u32 %s48, 1
          %s145 = scalar_lea.sflag [#allocation3], %s144
          %s146 = sand.u32 %s48, 1
          %s147 = smul.addr %s146, 256
          %s148 = scalar_lea.vmem [#allocation2], %s147
          %s149 = smul.u32 32, %s25
          %151 = vsyncadd %s145, 0
          %s152 = smul.addr %s24, 32
          %s153 = sadd.s32 %s149, %s152
          %s154 = smul.addr %s153, 8
          %s155 = scalar_lea.hbm %s0, %s154
          %s156 = sshll.u32 %s155, 4
          %s157 = int_to_ptr.hbm [resolvable:$true] %s156
          %s158 = sshll.u32 %s148, 4
          %s159 = int_to_ptr.vmem [resolvable:$true] %s158
          %164 = dma.hbm_to_vmem [thread:$0]  %s157, 4096, %s159, %s145, 128, 128, 8
        $region20: #{tpu_custom_call.1} parent=15 // pred_fallthru
          _
        // Predicated region
        $region21: #{tpu_custom_call.1} parent=15 // pred_check
          %p165 = pneg %p86
        $region22: #{tpu_custom_call.1} parent=15 // pred_check_branch
          %167 = sbr.rel (%p165) target = $region24
        $region23: #{tpu_custom_call.1} parent=15 // pred_region
          %s168 = sand.u32 %s76, 1
          %s169 = scalar_lea.sflag [#allocation6], %s168
          %s170 = sand.u32 %s76, 1
          %s171 = smul.addr %s170, 256
          %s172 = scalar_lea.vmem [#allocation5], %s171
          %s173 = smul.u32 32, %s26
          %175 = vsyncadd %s169, 0
          %s176 = smul.addr %s24, 32
          %s177 = sadd.s32 %s173, %s176
          %s178 = smul.addr %s177, 8
          %s179 = scalar_lea.hbm %s1, %s178
          %s180 = sshll.u32 %s179, 4
          %s181 = int_to_ptr.hbm [resolvable:$true] %s180
          %s182 = sshll.u32 %s172, 4
          %s183 = int_to_ptr.vmem [resolvable:$true] %s182
          %188 = dma.hbm_to_vmem [thread:$0]  %s181, 4096, %s183, %s169, 128, 128, 8
        $region24: #{tpu_custom_call.1} parent=15 // pred_fallthru
          _
      $region16: #{tpu_custom_call.1} parent=5 // pred_fallthru
        _
      %p189 = scmp.le.s32.totalorder 1, %s17
      %p190 = scmp.lt.s32.totalorder %s17, 9
      %p191 = pnand %p189, %p190
      %p192 = pneg %p191
      // Predicated region
      $region25: #{tpu_custom_call.1} parent=5 // pred_check
        _
      $region26: #{tpu_custom_call.1} parent=5 // pred_check_branch
        %194 = sbr.rel (%p191) target = $region28
      $region27: #{tpu_custom_call.1} parent=5 // pred_region
        %s195 = ssub.s32 %s17, 1
        %s196 = sand.u32 %s51, 1
        %s197 = scalar_lea.sflag [#allocation3], %s196
        %s198 = sand.u32 %s51, 1
        %s199 = smul.addr %s198, 256
        %s200 = scalar_lea.vmem [#allocation2], %s199
        // Predicated region
        $region29: #{tpu_custom_call.1} parent=27 // pred_check
          %p201 = pneg %p64
        $region30: #{tpu_custom_call.1} parent=27 // pred_check_branch
          %203 = sbr.rel (%p201) target = $region32
        $region31: #{tpu_custom_call.1} parent=27 // pred_region
          %205 = dma.done %s197, 4096
        $region32: #{tpu_custom_call.1} parent=27 // pred_fallthru
          _
        %s206 = sand.u32 %s79, 1
        %s207 = scalar_lea.sflag [#allocation6], %s206
        %s208 = sand.u32 %s79, 1
        %s209 = smul.addr %s208, 256
        %s210 = scalar_lea.vmem [#allocation5], %s209
        // Predicated region
        $region33: #{tpu_custom_call.1} parent=27 // pred_check
          %p211 = pneg %p92
        $region34: #{tpu_custom_call.1} parent=27 // pred_check_branch
          %213 = sbr.rel (%p211) target = $region36
        $region35: #{tpu_custom_call.1} parent=27 // pred_region
          %215 = dma.done %s207, 4096
        $region36: #{tpu_custom_call.1} parent=27 // pred_fallthru
          _
        %s216 = sand.u32 %s51, 1
        %s217 = scalar_lea.sflag [#allocation3], %s216
        %s218 = sand.u32 %s51, 1
        %s219 = smul.addr %s218, 256
        %s220 = scalar_lea.vmem [#allocation2], %s219
        %p221 = pneg %p64
        %p222 = pneg %p61
        %s223 = sand.u32 %s79, 1
        %s224 = scalar_lea.sflag [#allocation6], %s223
        %s225 = sand.u32 %s79, 1
        %s226 = smul.addr %s225, 256
        %s227 = scalar_lea.vmem [#allocation5], %s226
        %p228 = pneg %p92
        %p229 = pneg %p89
        %p230 = pneg %p122
        %p231 = pneg %p119
        %s232 = sand.u32 %s109, 1
        %s233 = scalar_lea.sflag [#allocation4], %s232
        %s234 = sand.u32 %s109, 1
        %s235 = smul.addr %s234, 512
        %s236 = scalar_lea.vmem [#allocation7], %s235
        %s237 = smul.u32 32, %s28
        %s238 = smul.u32 32, %s29
        %s239 = smul.u32 32, %s28
        %s240 = smul.u32 2, %s29
        %v241 = vld [vmem:[%s200] sm:$0xff]
        %v242 = vld [vmem:[%s200 + $0x8] sm:$0xff]
        %v243 = vld [vmem:[%s200 + $0x10] sm:$0xff]
        %v244 = vld [vmem:[%s200 + $0x18] sm:$0xff]
        %v245 = vld [vmem:[%s200 + $0x20] sm:$0xff]
        %v246 = vld [vmem:[%s200 + $0x28] sm:$0xff]
        %v247 = vld [vmem:[%s200 + $0x30] sm:$0xff]
        %v248 = vld [vmem:[%s200 + $0x38] sm:$0xff]
        %v249 = vld [vmem:[%s200 + $0x40] sm:$0xff]
        %v250 = vld [vmem:[%s200 + $0x48] sm:$0xff]
        %v251 = vld [vmem:[%s200 + $0x50] sm:$0xff]
        %v252 = vld [vmem:[%s200 + $0x58] sm:$0xff]
        %v253 = vld [vmem:[%s200 + $0x60] sm:$0xff]
        %v254 = vld [vmem:[%s200 + $0x68] sm:$0xff]
        %v255 = vld [vmem:[%s200 + $0x70] sm:$0xff]
        %v256 = vld [vmem:[%s200 + $0x78] sm:$0xff]
        %v257 = vld [vmem:[%s200 + $0x80] sm:$0xff]
        %v258 = vld [vmem:[%s200 + $0x88] sm:$0xff]
        %v259 = vld [vmem:[%s200 + $0x90] sm:$0xff]
        %v260 = vld [vmem:[%s200 + $0x98] sm:$0xff]
        %v261 = vld [vmem:[%s200 + $0xa0] sm:$0xff]
        %v262 = vld [vmem:[%s200 + $0xa8] sm:$0xff]
        %v263 = vld [vmem:[%s200 + $0xb0] sm:$0xff]
        %v264 = vld [vmem:[%s200 + $0xb8] sm:$0xff]
        %v265 = vld [vmem:[%s200 + $0xc0] sm:$0xff]
        %v266 = vld [vmem:[%s200 + $0xc8] sm:$0xff]
        %v267 = vld [vmem:[%s200 + $0xd0] sm:$0xff]
        %v268 = vld [vmem:[%s200 + $0xd8] sm:$0xff]
        %v269 = vld [vmem:[%s200 + $0xe0] sm:$0xff]
        %v270 = vld [vmem:[%s200 + $0xe8] sm:$0xff]
        %v271 = vld [vmem:[%s200 + $0xf0] sm:$0xff]
        %v272 = vld [vmem:[%s200 + $0xf8] sm:$0xff]
        %v273 = vld [vmem:[%s210] sm:$0xff]
        %v274 = vld [vmem:[%s210 + $0x8] sm:$0xff]
        %v275 = vld [vmem:[%s210 + $0x10] sm:$0xff]
        %v276 = vld [vmem:[%s210 + $0x18] sm:$0xff]
        %v277 = vld [vmem:[%s210 + $0x20] sm:$0xff]
        %v278 = vld [vmem:[%s210 + $0x28] sm:$0xff]
        %v279 = vld [vmem:[%s210 + $0x30] sm:$0xff]
        %v280 = vld [vmem:[%s210 + $0x38] sm:$0xff]
        %v281 = vld [vmem:[%s210 + $0x40] sm:$0xff]
        %v282 = vld [vmem:[%s210 + $0x48] sm:$0xff]
        %v283 = vld [vmem:[%s210 + $0x50] sm:$0xff]
        %v284 = vld [vmem:[%s210 + $0x58] sm:$0xff]
        %v285 = vld [vmem:[%s210 + $0x60] sm:$0xff]
        %v286 = vld [vmem:[%s210 + $0x68] sm:$0xff]
        %v287 = vld [vmem:[%s210 + $0x70] sm:$0xff]
        %v288 = vld [vmem:[%s210 + $0x78] sm:$0xff]
        %v289 = vld [vmem:[%s210 + $0x80] sm:$0xff]
        %v290 = vld [vmem:[%s210 + $0x88] sm:$0xff]
        %v291 = vld [vmem:[%s210 + $0x90] sm:$0xff]
        %v292 = vld [vmem:[%s210 + $0x98] sm:$0xff]
        %v293 = vld [vmem:[%s210 + $0xa0] sm:$0xff]
        %v294 = vld [vmem:[%s210 + $0xa8] sm:$0xff]
        %v295 = vld [vmem:[%s210 + $0xb0] sm:$0xff]
        %v296 = vld [vmem:[%s210 + $0xb8] sm:$0xff]
        %v297 = vld [vmem:[%s210 + $0xc0] sm:$0xff]
        %v298 = vld [vmem:[%s210 + $0xc8] sm:$0xff]
        %v299 = vld [vmem:[%s210 + $0xd0] sm:$0xff]
        %v300 = vld [vmem:[%s210 + $0xd8] sm:$0xff]
        %v301 = vld [vmem:[%s210 + $0xe0] sm:$0xff]
        %v302 = vld [vmem:[%s210 + $0xe8] sm:$0xff]
        %v303 = vld [vmem:[%s210 + $0xf0] sm:$0xff]
        %v304 = vld [vmem:[%s210 + $0xf8] sm:$0xff]
        %305 = vmatpush.xpose.msra.mxu0 %v288
        %306 = vmatpush.xpose.msra.mxu0 %v287
        %307 = vmatpush.xpose.msra.mxu0 %v286
        %308 = vmatpush.xpose.msra.mxu0 %v285
        %309 = vmatpush.xpose.msra.mxu0 %v284
        %310 = vmatpush.xpose.msra.mxu0 %v283
        %311 = vmatpush.xpose.msra.mxu0 %v282
        %312 = vmatpush.xpose.msra.mxu0 %v281
        %313 = vmatpush.xpose.msra.mxu0 %v280
        %314 = vmatpush.xpose.msra.mxu0 %v279
        %315 = vmatpush.xpose.msra.mxu0 %v278
        %316 = vmatpush.xpose.msra.mxu0 %v277
        %317 = vmatpush.xpose.msra.mxu0 %v276
        %318 = vmatpush.xpose.msra.mxu0 %v275
        %319 = vmatpush.xpose.msra.mxu0 %v274
        %320 = vmatpush.xpose.msra.mxu0 %v273
        %321 = vmatmul.f32.gmra.mxu0 %v241
        %v322 = vpop.f32.mrf.mxu0
        %v323 = vadd.f32 0.0, %v322
        %324 = vmatmul.f32.gmra.mxu0 %v242
        %v325 = vpop.f32.mrf.mxu0
        %v326 = vadd.f32 0.0, %v325
        %327 = vmatmul.f32.gmra.mxu0 %v243
        %v328 = vpop.f32.mrf.mxu0
        %v329 = vadd.f32 0.0, %v328
        %330 = vmatmul.f32.gmra.mxu0 %v244
        %v331 = vpop.f32.mrf.mxu0
        %v332 = vadd.f32 0.0, %v331
        %333 = vmatmul.f32.gmra.mxu0 %v245
        %v334 = vpop.f32.mrf.mxu0
        %v335 = vadd.f32 0.0, %v334
        %336 = vmatmul.f32.gmra.mxu0 %v246
        %v337 = vpop.f32.mrf.mxu0
        %v338 = vadd.f32 0.0, %v337
        %339 = vmatmul.f32.gmra.mxu0 %v247
        %v340 = vpop.f32.mrf.mxu0
        %v341 = vadd.f32 0.0, %v340
        %342 = vmatmul.f32.gmra.mxu0 %v248
        %v343 = vpop.f32.mrf.mxu0
        %v344 = vadd.f32 0.0, %v343
        %345 = vmatmul.f32.gmra.mxu0 %v249
        %v346 = vpop.f32.mrf.mxu0
        %v347 = vadd.f32 0.0, %v346
        %348 = vmatmul.f32.gmra.mxu0 %v250
        %v349 = vpop.f32.mrf.mxu0
        %v350 = vadd.f32 0.0, %v349
        %351 = vmatmul.f32.gmra.mxu0 %v251
        %v352 = vpop.f32.mrf.mxu0
        %v353 = vadd.f32 0.0, %v352
        %354 = vmatmul.f32.gmra.mxu0 %v252
        %v355 = vpop.f32.mrf.mxu0
        %v356 = vadd.f32 0.0, %v355
        %357 = vmatmul.f32.gmra.mxu0 %v253
        %v358 = vpop.f32.mrf.mxu0
        %v359 = vadd.f32 0.0, %v358
        %360 = vmatmul.f32.gmra.mxu0 %v254
        %v361 = vpop.f32.mrf.mxu0
        %v362 = vadd.f32 0.0, %v361
        %363 = vmatmul.f32.gmra.mxu0 %v255
        %v364 = vpop.f32.mrf.mxu0
        %v365 = vadd.f32 0.0, %v364
        %366 = vmatmul.f32.gmra.mxu0 %v256
        %v367 = vpop.f32.mrf.mxu0
        %v368 = vadd.f32 0.0, %v367
        %369 = vmatmul.f32.gmra.mxu0 %v257
        %v370 = vpop.f32.mrf.mxu0
        %v371 = vadd.f32 0.0, %v370
        %372 = vmatmul.f32.gmra.mxu0 %v258
        %v373 = vpop.f32.mrf.mxu0
        %v374 = vadd.f32 0.0, %v373
        %375 = vmatmul.f32.gmra.mxu0 %v259
        %v376 = vpop.f32.mrf.mxu0
        %v377 = vadd.f32 0.0, %v376
        %378 = vmatmul.f32.gmra.mxu0 %v260
        %v379 = vpop.f32.mrf.mxu0
        %v380 = vadd.f32 0.0, %v379
        %381 = vmatmul.f32.gmra.mxu0 %v261
        %v382 = vpop.f32.mrf.mxu0
        %v383 = vadd.f32 0.0, %v382
        %384 = vmatmul.f32.gmra.mxu0 %v262
        %v385 = vpop.f32.mrf.mxu0
        %v386 = vadd.f32 0.0, %v385
        %387 = vmatmul.f32.gmra.mxu0 %v263
        %v388 = vpop.f32.mrf.mxu0
        %v389 = vadd.f32 0.0, %v388
        %390 = vmatmul.f32.gmra.mxu0 %v264
        %v391 = vpop.f32.mrf.mxu0
        %v392 = vadd.f32 0.0, %v391
        %393 = vmatmul.f32.gmra.mxu0 %v265
        %v394 = vpop.f32.mrf.mxu0
        %v395 = vadd.f32 0.0, %v394
        %396 = vmatmul.f32.gmra.mxu0 %v266
        %v397 = vpop.f32.mrf.mxu0
        %v398 = vadd.f32 0.0, %v397
        %399 = vmatmul.f32.gmra.mxu0 %v267
        %v400 = vpop.f32.mrf.mxu0
        %v401 = vadd.f32 0.0, %v400
        %402 = vmatmul.f32.gmra.mxu0 %v268
        %v403 = vpop.f32.mrf.mxu0
        %v404 = vadd.f32 0.0, %v403
        %405 = vmatmul.f32.gmra.mxu0 %v269
        %v406 = vpop.f32.mrf.mxu0
        %v407 = vadd.f32 0.0, %v406
        %408 = vmatmul.f32.gmra.mxu0 %v270
        %v409 = vpop.f32.mrf.mxu0
        %v410 = vadd.f32 0.0, %v409
        %411 = vmatmul.f32.gmra.mxu0 %v271
        %v412 = vpop.f32.mrf.mxu0
        %v413 = vadd.f32 0.0, %v412
        %414 = vmatmul.f32.gmra.mxu0 %v272
        %v415 = vpop.f32.mrf.mxu0
        %v416 = vadd.f32 0.0, %v415
        %417 = vdwg.mxu0
        %418 = vmatpush.xpose.msra.mxu0 %v304
        %419 = vmatpush.xpose.msra.mxu0 %v303
        %420 = vmatpush.xpose.msra.mxu0 %v302
        %421 = vmatpush.xpose.msra.mxu0 %v301
        %422 = vmatpush.xpose.msra.mxu0 %v300
        %423 = vmatpush.xpose.msra.mxu0 %v299
        %424 = vmatpush.xpose.msra.mxu0 %v298
        %425 = vmatpush.xpose.msra.mxu0 %v297
        %426 = vmatpush.xpose.msra.mxu0 %v296
        %427 = vmatpush.xpose.msra.mxu0 %v295
        %428 = vmatpush.xpose.msra.mxu0 %v294
        %429 = vmatpush.xpose.msra.mxu0 %v293
        %430 = vmatpush.xpose.msra.mxu0 %v292
        %431 = vmatpush.xpose.msra.mxu0 %v291
        %432 = vmatpush.xpose.msra.mxu0 %v290
        %433 = vmatpush.xpose.msra.mxu0 %v289
        %434 = vmatmul.f32.gmra.mxu0 %v241
        %v435 = vpop.f32.mrf.mxu0
        %v436 = vadd.f32 0.0, %v435
        %437 = vmatmul.f32.gmra.mxu0 %v242
        %v438 = vpop.f32.mrf.mxu0
        %v439 = vadd.f32 0.0, %v438
        %440 = vmatmul.f32.gmra.mxu0 %v243
        %v441 = vpop.f32.mrf.mxu0
        %v442 = vadd.f32 0.0, %v441
        %443 = vmatmul.f32.gmra.mxu0 %v244
        %v444 = vpop.f32.mrf.mxu0
        %v445 = vadd.f32 0.0, %v444
        %446 = vmatmul.f32.gmra.mxu0 %v245
        %v447 = vpop.f32.mrf.mxu0
        %v448 = vadd.f32 0.0, %v447
        %449 = vmatmul.f32.gmra.mxu0 %v246
        %v450 = vpop.f32.mrf.mxu0
        %v451 = vadd.f32 0.0, %v450
        %452 = vmatmul.f32.gmra.mxu0 %v247
        %v453 = vpop.f32.mrf.mxu0
        %v454 = vadd.f32 0.0, %v453
        %455 = vmatmul.f32.gmra.mxu0 %v248
        %v456 = vpop.f32.mrf.mxu0
        %v457 = vadd.f32 0.0, %v456
        %458 = vmatmul.f32.gmra.mxu0 %v249
        %v459 = vpop.f32.mrf.mxu0
        %v460 = vadd.f32 0.0, %v459
        %461 = vmatmul.f32.gmra.mxu0 %v250
        %v462 = vpop.f32.mrf.mxu0
        %v463 = vadd.f32 0.0, %v462
        %464 = vmatmul.f32.gmra.mxu0 %v251
        %v465 = vpop.f32.mrf.mxu0
        %v466 = vadd.f32 0.0, %v465
        %467 = vmatmul.f32.gmra.mxu0 %v252
        %v468 = vpop.f32.mrf.mxu0
        %v469 = vadd.f32 0.0, %v468
        %470 = vmatmul.f32.gmra.mxu0 %v253
        %v471 = vpop.f32.mrf.mxu0
        %v472 = vadd.f32 0.0, %v471
        %473 = vmatmul.f32.gmra.mxu0 %v254
        %v474 = vpop.f32.mrf.mxu0
        %v475 = vadd.f32 0.0, %v474
        %476 = vmatmul.f32.gmra.mxu0 %v255
        %v477 = vpop.f32.mrf.mxu0
        %v478 = vadd.f32 0.0, %v477
        %479 = vmatmul.f32.gmra.mxu0 %v256
        %v480 = vpop.f32.mrf.mxu0
        %v481 = vadd.f32 0.0, %v480
        %482 = vmatmul.f32.gmra.mxu0 %v257
        %v483 = vpop.f32.mrf.mxu0
        %v484 = vadd.f32 0.0, %v483
        %485 = vmatmul.f32.gmra.mxu0 %v258
        %v486 = vpop.f32.mrf.mxu0
        %v487 = vadd.f32 0.0, %v486
        %488 = vmatmul.f32.gmra.mxu0 %v259
        %v489 = vpop.f32.mrf.mxu0
        %v490 = vadd.f32 0.0, %v489
        %491 = vmatmul.f32.gmra.mxu0 %v260
        %v492 = vpop.f32.mrf.mxu0
        %v493 = vadd.f32 0.0, %v492
        %494 = vmatmul.f32.gmra.mxu0 %v261
        %v495 = vpop.f32.mrf.mxu0
        %v496 = vadd.f32 0.0, %v495
        %497 = vmatmul.f32.gmra.mxu0 %v262
        %v498 = vpop.f32.mrf.mxu0
        %v499 = vadd.f32 0.0, %v498
        %500 = vmatmul.f32.gmra.mxu0 %v263
        %v501 = vpop.f32.mrf.mxu0
        %v502 = vadd.f32 0.0, %v501
        %503 = vmatmul.f32.gmra.mxu0 %v264
        %v504 = vpop.f32.mrf.mxu0
        %v505 = vadd.f32 0.0, %v504
        %506 = vmatmul.f32.gmra.mxu0 %v265
        %v507 = vpop.f32.mrf.mxu0
        %v508 = vadd.f32 0.0, %v507
        %509 = vmatmul.f32.gmra.mxu0 %v266
        %v510 = vpop.f32.mrf.mxu0
        %v511 = vadd.f32 0.0, %v510
        %512 = vmatmul.f32.gmra.mxu0 %v267
        %v513 = vpop.f32.mrf.mxu0
        %v514 = vadd.f32 0.0, %v513
        %515 = vmatmul.f32.gmra.mxu0 %v268
        %v516 = vpop.f32.mrf.mxu0
        %v517 = vadd.f32 0.0, %v516
        %518 = vmatmul.f32.gmra.mxu0 %v269
        %v519 = vpop.f32.mrf.mxu0
        %v520 = vadd.f32 0.0, %v519
        %521 = vmatmul.f32.gmra.mxu0 %v270
        %v522 = vpop.f32.mrf.mxu0
        %v523 = vadd.f32 0.0, %v522
        %524 = vmatmul.f32.gmra.mxu0 %v271
        %v525 = vpop.f32.mrf.mxu0
        %v526 = vadd.f32 0.0, %v525
        %527 = vmatmul.f32.gmra.mxu0 %v272
        %v528 = vpop.f32.mrf.mxu0
        %v529 = vadd.f32 0.0, %v528
        %530 = vdwg.mxu0
        %531 = vst [vmem:[%s236] sm:$0xff] %v323
        %532 = vst [vmem:[%s236 + $0x8] sm:$0xff] %v436
        %533 = vst [vmem:[%s236 + $0x10] sm:$0xff] %v326
        %534 = vst [vmem:[%s236 + $0x18] sm:$0xff] %v439
        %535 = vst [vmem:[%s236 + $0x20] sm:$0xff] %v329
        %536 = vst [vmem:[%s236 + $0x28] sm:$0xff] %v442
        %537 = vst [vmem:[%s236 + $0x30] sm:$0xff] %v332
        %538 = vst [vmem:[%s236 + $0x38] sm:$0xff] %v445
        %539 = vst [vmem:[%s236 + $0x40] sm:$0xff] %v335
        %540 = vst [vmem:[%s236 + $0x48] sm:$0xff] %v448
        %541 = vst [vmem:[%s236 + $0x50] sm:$0xff] %v338
        %542 = vst [vmem:[%s236 + $0x58] sm:$0xff] %v451
        %543 = vst [vmem:[%s236 + $0x60] sm:$0xff] %v341
        %544 = vst [vmem:[%s236 + $0x68] sm:$0xff] %v454
        %545 = vst [vmem:[%s236 + $0x70] sm:$0xff] %v344
        %546 = vst [vmem:[%s236 + $0x78] sm:$0xff] %v457
        %547 = vst [vmem:[%s236 + $0x80] sm:$0xff] %v347
        %548 = vst [vmem:[%s236 + $0x88] sm:$0xff] %v460
        %549 = vst [vmem:[%s236 + $0x90] sm:$0xff] %v350
        %550 = vst [vmem:[%s236 + $0x98] sm:$0xff] %v463
        %551 = vst [vmem:[%s236 + $0xa0] sm:$0xff] %v353
        %552 = vst [vmem:[%s236 + $0xa8] sm:$0xff] %v466
        %553 = vst [vmem:[%s236 + $0xb0] sm:$0xff] %v356
        %554 = vst [vmem:[%s236 + $0xb8] sm:$0xff] %v469
        %555 = vst [vmem:[%s236 + $0xc0] sm:$0xff] %v359
        %556 = vst [vmem:[%s236 + $0xc8] sm:$0xff] %v472
        %557 = vst [vmem:[%s236 + $0xd0] sm:$0xff] %v362
        %558 = vst [vmem:[%s236 + $0xd8] sm:$0xff] %v475
        %559 = vst [vmem:[%s236 + $0xe0] sm:$0xff] %v365
        %560 = vst [vmem:[%s236 + $0xe8] sm:$0xff] %v478
        %561 = vst [vmem:[%s236 + $0xf0] sm:$0xff] %v368
        %562 = vst [vmem:[%s236 + $0xf8] sm:$0xff] %v481
        %563 = vst [vmem:[%s236 + $0x100] sm:$0xff] %v371
        %564 = vst [vmem:[%s236 + $0x108] sm:$0xff] %v484
        %565 = vst [vmem:[%s236 + $0x110] sm:$0xff] %v374
        %566 = vst [vmem:[%s236 + $0x118] sm:$0xff] %v487
        %567 = vst [vmem:[%s236 + $0x120] sm:$0xff] %v377
        %568 = vst [vmem:[%s236 + $0x128] sm:$0xff] %v490
        %569 = vst [vmem:[%s236 + $0x130] sm:$0xff] %v380
        %570 = vst [vmem:[%s236 + $0x138] sm:$0xff] %v493
        %571 = vst [vmem:[%s236 + $0x140] sm:$0xff] %v383
        %572 = vst [vmem:[%s236 + $0x148] sm:$0xff] %v496
        %573 = vst [vmem:[%s236 + $0x150] sm:$0xff] %v386
        %574 = vst [vmem:[%s236 + $0x158] sm:$0xff] %v499
        %575 = vst [vmem:[%s236 + $0x160] sm:$0xff] %v389
        %576 = vst [vmem:[%s236 + $0x168] sm:$0xff] %v502
        %577 = vst [vmem:[%s236 + $0x170] sm:$0xff] %v392
        %578 = vst [vmem:[%s236 + $0x178] sm:$0xff] %v505
        %579 = vst [vmem:[%s236 + $0x180] sm:$0xff] %v395
        %580 = vst [vmem:[%s236 + $0x188] sm:$0xff] %v508
        %581 = vst [vmem:[%s236 + $0x190] sm:$0xff] %v398
        %582 = vst [vmem:[%s236 + $0x198] sm:$0xff] %v511
        %583 = vst [vmem:[%s236 + $0x1a0] sm:$0xff] %v401
        %584 = vst [vmem:[%s236 + $0x1a8] sm:$0xff] %v514
        %585 = vst [vmem:[%s236 + $0x1b0] sm:$0xff] %v404
        %586 = vst [vmem:[%s236 + $0x1b8] sm:$0xff] %v517
        %587 = vst [vmem:[%s236 + $0x1c0] sm:$0xff] %v407
        %588 = vst [vmem:[%s236 + $0x1c8] sm:$0xff] %v520
        %589 = vst [vmem:[%s236 + $0x1d0] sm:$0xff] %v410
        %590 = vst [vmem:[%s236 + $0x1d8] sm:$0xff] %v523
        %591 = vst [vmem:[%s236 + $0x1e0] sm:$0xff] %v413
        %592 = vst [vmem:[%s236 + $0x1e8] sm:$0xff] %v526
        %593 = vst [vmem:[%s236 + $0x1f0] sm:$0xff] %v416
        %594 = vst [vmem:[%s236 + $0x1f8] sm:$0xff] %v529
        %s595 = sand.u32 %s109, 1
        %s596 = scalar_lea.sflag [#allocation4], %s595
        %s597 = sand.u32 %s109, 1
        %s598 = smul.addr %s597, 512
        %s599 = scalar_lea.vmem [#allocation7], %s598
        // Predicated region
        $region37: #{tpu_custom_call.1} parent=27 // pred_check
          %p600 = pneg %p119
        $region38: #{tpu_custom_call.1} parent=27 // pred_check_branch
          %602 = sbr.rel (%p600) target = $region40
        $region39: #{tpu_custom_call.1} parent=27 // pred_region
          %s603 = smul.u32 32, %s28
          %s604 = smul.u32 2, %s29
          %606 = vsyncadd %s596, 0
          %s607 = smul.addr %s603, 2
          %s608 = sadd.s32 %s604, %s607
          %s609 = smul.addr %s27, 64
          %s610 = sadd.s32 %s608, %s609
          %s611 = smul.addr %s610, 8
          %s612 = scalar_lea.hbm %s2, %s611
          %s613 = sshll.u32 %s599, 4
          %s614 = int_to_ptr.vmem [resolvable:$true] %s613
          %s615 = sshll.u32 %s612, 4
          %s616 = int_to_ptr.hbm [resolvable:$true] %s615
          %621 = dma.vmem_to_hbm [thread:$0]  %s614, 8192, %s616, %s596, 256, 256, 16
        $region40: #{tpu_custom_call.1} parent=27 // pred_fallthru
          _
      $region28: #{tpu_custom_call.1} parent=5 // pred_fallthru
        _
      %p622 = scmp.le.s32.totalorder 2, %s17
      // Predicated region
      $region41: #{tpu_custom_call.1} parent=5 // pred_check
        %p623 = pneg %p622
      $region42: #{tpu_custom_call.1} parent=5 // pred_check_branch
        %625 = sbr.rel (%p623) target = $region44
      $region43: #{tpu_custom_call.1} parent=5 // pred_region
        %s626 = ssub.s32 %s17, 2
        // Predicated region
        $region45: #{tpu_custom_call.1} parent=43 // pred_check
          %p627 = pneg %p125
        $region46: #{tpu_custom_call.1} parent=43 // pred_check_branch
          %629 = sbr.rel (%p627) target = $region48
        $region47: #{tpu_custom_call.1} parent=43 // pred_region
          %s630 = sand.u32 %s110, 1
          %s631 = scalar_lea.sflag [#allocation4], %s630
          %s632 = sand.u32 %s110, 1
          %s633 = smul.addr %s632, 512
          %s634 = scalar_lea.vmem [#allocation7], %s633
          %636 = dma.done %s631, 8192
        $region48: #{tpu_custom_call.1} parent=43 // pred_fallthru
          _
      $region44: #{tpu_custom_call.1} parent=5 // pred_fallthru
        _
    $region6: #{tpu_custom_call.1} parent=1 // loop_footer
      %s21 = sadd.s32 1, %s17
    $region7: #{tpu_custom_call.1} parent=1 // loop_footer_branch
      %16 = sbr.rel target = $region3
    $region8: #{tpu_custom_call.1} parent=1 // loop_exit
      _
    %637 = vsyncpa [#allocation3], 1
    %s638 = scalar_lea.sflag [#allocation3], 1
    %639 = vsyncpa %s638, 1
    %640 = vsyncpa [#allocation6], 1
    %s641 = scalar_lea.sflag [#allocation6], 1
    %642 = vsyncpa %s641, 1
    %643 = vsyncpa [#allocation4], 1
    %s644 = scalar_lea.sflag [#allocation4], 1
    %645 = vsyncpa %s644, 1

</llo_original>
